<compile_context>
chip_gen: v7x
topology: tpu7x:2x2x1
jax: 0.10.0
libtpu: 0.0.40
codegen_flags: <defaults>
</compile_context>

<pallas_src>
import jax
import jax.numpy as jnp
from jax.experimental import pallas as pl
from jax.experimental.pallas import tpu as pltpu

_LANE = 128


def _round_up(n, mult):
    return ((n + mult - 1) // mult) * mult


def _sublane_multiple(dtype):
    # (8,128) vreg tile holds 8 rows of 32-bit; sub-32-bit dtypes pack sublanes.
    itemsize = jnp.dtype(dtype).itemsize
    return 8 * max(1, 4 // max(itemsize, 1))


def _ea_forward_kernel(x_ref, mask_ref, m_ref, logs_ref, y_ref):
    x = x_ref[0]                      # (C_pad, tile_T)
    mask = mask_ref[0]                # (1, tile_T)
    m = m_ref[...]                    # (C_pad, 1)
    scale = jnp.exp(logs_ref[...])    # (C_pad, 1)  -- tiny, lands on EUP
    # y = (m + exp(logs) * x) * x_mask
    y_ref[0] = ((m + scale * x) * mask).astype(y_ref.dtype)


def _ea_reverse_kernel(x_ref, mask_ref, m_ref, logs_ref, y_ref):
    x = x_ref[0]                      # (C_pad, tile_T)
    mask = mask_ref[0]                # (1, tile_T)
    m = m_ref[...]                    # (C_pad, 1)
    inv_scale = jnp.exp(-logs_ref[...])
    # x_rec = (x - m) * exp(-logs) * x_mask
    y_ref[0] = ((x - m) * inv_scale * mask).astype(y_ref.dtype)


def _elementwise_affine_call(kernel, x, x_mask, m, logs, *, tile_t=512):
    B, C, T = x.shape
    dtype = x.dtype

    # Hardware-friendly padded shapes: C to a sublane multiple, T to a
    # multiple of a lane-dense tile (<= tile_t, multiple of 128).
    c_pad = _round_up(C, _sublane_multiple(dtype))
    tile_T = min(_round_up(tile_t, _LANE), _round_up(T, _LANE))
    t_pad = _round_up(T, tile_T)

    x_p = jnp.pad(x, ((0, 0), (0, c_pad - C), (0, t_pad - T)))
    mask_p = jnp.pad(x_mask.astype(dtype), ((0, 0), (0, 0), (0, t_pad - T)))
    m_p = jnp.pad(m.astype(dtype), ((0, c_pad - C), (0, 0)))
    logs_p = jnp.pad(logs.astype(dtype), ((0, c_pad - C), (0, 0)))

    grid = (B, t_pad // tile_T)

    y_p = pl.pallas_call(
        kernel,
        out_shape=jax.ShapeDtypeStruct((B, c_pad, t_pad), dtype),
        grid_spec=pltpu.PrefetchScalarGridSpec(
            num_scalar_prefetch=0,
            grid=grid,
            in_specs=[
                pl.BlockSpec((1, c_pad, tile_T), lambda b, t: (b, 0, t)),  # x
                pl.BlockSpec((1, 1, tile_T), lambda b, t: (b, 0, t)),      # x_mask
                pl.BlockSpec((c_pad, 1), lambda b, t: (0, 0)),             # m (replicated)
                pl.BlockSpec((c_pad, 1), lambda b, t: (0, 0)),             # logs (replicated)
            ],
            out_specs=pl.BlockSpec((1, c_pad, tile_T), lambda b, t: (b, 0, t)),
        ),
        compiler_params=pltpu.CompilerParams(
            # Purely elementwise: both axes independent -> megacore sharding on v7x.
            dimension_semantics=("parallel", "parallel")),
    )(x_p, mask_p, m_p, logs_p)

    return y_p[:, :C, :T]


def elementwise_affine_forward(x, x_mask, m, logs, *, tile_t=512):
    """Returns (y, logdet): y (B,C,T), logdet (B,)."""
    y = _elementwise_affine_call(_ea_forward_kernel, x, x_mask, m, logs,
                                 tile_t=tile_t)
    # logdet[b] = sum_{c,t} logs[c] * mask[b,t] = sum(logs) * sum_t(mask[b]).
    # Hoisted out of the kernel (O(C + T) work instead of O(C*T) per step).
    logdet = jnp.sum(logs.astype(jnp.float32)) * jnp.sum(
        x_mask.astype(jnp.float32), axis=(1, 2))
    return y, logdet


def elementwise_affine_reverse(x, x_mask, m, logs, *, tile_t=512):
    """Returns x_rec (B,C,T) for the reverse=True branch."""
    return _elementwise_affine_call(_ea_reverse_kernel, x, x_mask, m, logs,
                                    tile_t=tile_t)


if __name__ == "__main__":
    B, C, T = 2, 4, 16

    key = jax.random.PRNGKey(0)
    kx, km, kl = jax.random.split(key, 3)

    x = jax.random.normal(kx, (B, C, T), dtype=jnp.float32)
    # Mask: first example full length, second masked after t=10.
    lengths = jnp.array([T, 10], dtype=jnp.int32)
    x_mask = (jnp.arange(T)[None, None, :] < lengths[:, None, None]).astype(jnp.float32)

    # nn.Parameter(torch.zeros(channels, 1)) -> shape (C, 1). Default init is
    # zeros; use small deterministic random values so the affine is exercised.
    m = 0.1 * jax.random.normal(km, (C, 1), dtype=jnp.float32)
    logs = 0.1 * jax.random.normal(kl, (C, 1), dtype=jnp.float32)

    y, logdet = jax.block_until_ready(elementwise_affine_forward(x, x_mask, m, logs))
    x_rec = jax.block_until_ready(elementwise_affine_reverse(y, x_mask, m, logs))

    # Pure-JAX reference (mirrors the PyTorch forward).
    y_ref = (m[None] + jnp.exp(logs)[None] * x) * x_mask
    logdet_ref = jnp.sum(logs[None] * x_mask, axis=(1, 2))
    x_rec_ref = (y_ref - m[None]) * jnp.exp(-logs)[None] * x_mask

    assert y.shape == (B, C, T) and logdet.shape == (B,)
    assert jnp.allclose(y, y_ref, atol=1e-6, rtol=1e-6)
    assert jnp.allclose(logdet, logdet_ref, atol=1e-6, rtol=1e-6)
    assert jnp.allclose(x_rec, x_rec_ref, atol=1e-6, rtol=1e-6)
    assert jnp.allclose(x_rec, x * x_mask, atol=1e-5, rtol=1e-5)  # invertibility

    print("KERNEL_OK")
</pallas_src>

<mosaic_0001>
module attributes {stable_mosaic.version = 11 : i64} {
  func.func @_ea_forward_kernel(%arg0: i32, %arg1: i32, %arg2: memref<1x8x128xf32, #tpu.memory_space<vmem>>, %arg3: memref<1x1x128xf32, #tpu.memory_space<vmem>>, %arg4: memref<8x1xf32, #tpu.memory_space<vmem>>, %arg5: memref<8x1xf32, #tpu.memory_space<vmem>>, %arg6: memref<1x8x128xf32, #tpu.memory_space<vmem>>) attributes {dimension_semantics = [#tpu.dimension_semantics<parallel>, #tpu.dimension_semantics<parallel>], iteration_bounds = array<i64: 2, 1>, scalar_prefetch = 0 : i64, scratch_operands = 0 : i64, tpu.core_type = #tpu.core_type<tc>, window_params = [{transform_indices = @transform_0, window_bounds = array<i64: 1, 8, 128>}, {transform_indices = @transform_1, window_bounds = array<i64: 1, 1, 128>}, {pipeline_mode = #tpu.pipeline_mode<synchronous>, transform_indices = @transform_2, window_bounds = array<i64: 8, 1>}, {pipeline_mode = #tpu.pipeline_mode<synchronous>, transform_indices = @transform_3, window_bounds = array<i64: 8, 1>}, {transform_indices = @transform_4, window_bounds = array<i64: 1, 8, 128>}]} {
    %c0 = arith.constant 0 : index
    %c0_0 = arith.constant 0 : index
    %c0_1 = arith.constant 0 : index
    %0 = vector.load %arg2[%c0, %c0_0, %c0_1] : memref<1x8x128xf32, #tpu.memory_space<vmem>>, vector<1x8x128xf32>
    %1 = vector.shape_cast %0 : vector<1x8x128xf32> to vector<8x128xf32>
    %c0_2 = arith.constant 0 : index
    %c0_3 = arith.constant 0 : index
    %c0_4 = arith.constant 0 : index
    %2 = vector.load %arg3[%c0_2, %c0_3, %c0_4] : memref<1x1x128xf32, #tpu.memory_space<vmem>>, vector<1x1x128xf32>
    %3 = vector.shape_cast %2 : vector<1x1x128xf32> to vector<1x128xf32>
    %c0_5 = arith.constant 0 : index
    %c0_6 = arith.constant 0 : index
    %4 = vector.load %arg4[%c0_5, %c0_6] : memref<8x1xf32, #tpu.memory_space<vmem>>, vector<8x1xf32>
    %c0_7 = arith.constant 0 : index
    %c0_8 = arith.constant 0 : index
    %5 = vector.load %arg5[%c0_7, %c0_8] : memref<8x1xf32, #tpu.memory_space<vmem>>, vector<8x1xf32>
    %6 = math.exp %5 : vector<8x1xf32>
    %7 = vector.broadcast %6 : vector<8x1xf32> to vector<8x128xf32>
    %8 = arith.mulf %7, %1 : vector<8x128xf32>
    %9 = vector.broadcast %4 : vector<8x1xf32> to vector<8x128xf32>
    %10 = arith.addf %9, %8 : vector<8x128xf32>
    %11 = vector.broadcast %3 : vector<1x128xf32> to vector<8x128xf32>
    %12 = arith.mulf %10, %11 : vector<8x128xf32>
    %c0_9 = arith.constant 0 : index
    %c0_10 = arith.constant 0 : index
    %c0_11 = arith.constant 0 : index
    %13 = vector.load %arg6[%c0_9, %c0_10, %c0_11] : memref<1x8x128xf32, #tpu.memory_space<vmem>>, vector<1x8x128xf32>
    %14 = vector.shape_cast %13 : vector<1x8x128xf32> to vector<8x128xf32>
    %15 = vector.shape_cast %12 : vector<8x128xf32> to vector<1x8x128xf32>
    tpu.vector_store %arg6[%c0_9, %c0_10, %c0_11], %15 {strides = array<i32>} : memref<1x8x128xf32, #tpu.memory_space<vmem>>, vector<1x8x128xf32>,
    return
  }
  func.func @transform_0(%arg0: i32, %arg1: i32) -> (i32, i32, i32) {
    %c0_i32 = arith.constant 0 : i32
    %c0_i32_0 = arith.constant 0 : i32
    return %arg0, %c0_i32, %arg1 : i32, i32, i32
  }
  func.func @transform_1(%arg0: i32, %arg1: i32) -> (i32, i32, i32) {
    %c0_i32 = arith.constant 0 : i32
    %c0_i32_0 = arith.constant 0 : i32
    return %arg0, %c0_i32, %arg1 : i32, i32, i32
  }
  func.func @transform_2(%arg0: i32, %arg1: i32) -> (i32, i32) {
    %c0_i32 = arith.constant 0 : i32
    %c0_i32_0 = arith.constant 0 : i32
    %c0_i32_1 = arith.constant 0 : i32
    return %c0_i32, %c0_i32_0 : i32, i32
  }
  func.func @transform_3(%arg0: i32, %arg1: i32) -> (i32, i32) {
    %c0_i32 = arith.constant 0 : i32
    %c0_i32_0 = arith.constant 0 : i32
    %c0_i32_1 = arith.constant 0 : i32
    return %c0_i32, %c0_i32_0 : i32, i32
  }
  func.func @transform_4(%arg0: i32, %arg1: i32) -> (i32, i32, i32) {
    %c0_i32 = arith.constant 0 : i32
    %c0_i32_0 = arith.constant 0 : i32
    return %arg0, %c0_i32, %arg1 : i32, i32, i32
  }
}

</mosaic_0001>

<llo_original>
// kernel: tpu_custom_call.1
$region0: #{tpu_custom_call.1}
  #allocation0 [shape = 'u32[]', space=smem, size = 0x4, offset = 0x4, fixed_abs, tag = 'smem constant byte address 0x4 - core index']
  #allocation1 [shape = 'u32[144,128]{1,0:T(1,128)}', space=vmem, size = 0x12000, scoped, tag = 'internal scratch']
  %s0 = inlined_call_operand.vmem [shape: f32[2,8,128], index: 0, kind: input, shape index: {}]
  %s1 = inlined_call_operand.vmem [shape: f32[2,1,128], index: 1, kind: input, shape index: {}]
  %s2 = inlined_call_operand.vmem [shape: f32[8,1], index: 2, kind: input, shape index: {}]
  %s3 = inlined_call_operand.vmem [shape: f32[8,1], index: 3, kind: input, shape index: {}]
  %s4 = inlined_call_operand.hbm [shape: f32[2,8,128], index: 4, kind: output, shape index: {}]
  %s5 = sld [smem:[#allocation0]]
  $region49: #{tpu_custom_call.1} parent=0
    _
  %s7 = ssub.s32 1, %s5
  %s8 = scalar_select 0, %s7, %s5
  $region1: #{tpu_custom_call.1} parent=0
    #allocation2 [shape = 'u8[8192]{0}', space=vmem, size = 0x2000, scoped, tag = 'output window, operand 0']
    #allocation3 [shape = 's32[2]{0}', space=sflag, size = 0x8, scoped, tag = 'scoped memory for tpu_custom_call.1']
    %9 = vsyncpa [#allocation3], 0
    %s10 = scalar_lea.sflag [#allocation3], 1
    %11 = vsyncpa %s10, 0
    loop: start=0, step=1, limit=4
    $region2: #{tpu_custom_call.1} parent=1 // loop_pre_header
      _
    $region3: #{tpu_custom_call.1} parent=1 // loop_header
      %s13 = sphi 0, %s17
      %p14 = scmp.ge.s32.totalorder %s13, 4
      %s20 = sphi 0, %s32
      %s21 = sphi 0, %s28
      %s22 = sphi 0, %s20
      %s23 = sphi 0, %s21
      %s24 = sphi 0, %s22
      %s25 = sphi 0, %s23
      %s37 = sphi 0, %s39
      %s40 = sphi 0, %s37
      %s41 = sphi 0, %s40
      %s57 = sphi 0, %s41
      %s65 = sphi 0, %s67
      %s68 = sphi 0, %s65
      %s69 = sphi 0, %s68
      %s85 = sphi 0, %s69
      %s89 = sphi 0, %s89
      %s91 = sphi 0, %s89
      %s92 = sphi 0, %s91
      %s106 = sphi 0, %s92
      %s110 = sphi 0, %s110
      %s112 = sphi 0, %s110
      %s113 = sphi 0, %s112
      %s127 = sphi 0, %s113
      %s135 = sphi 0, %s137
      %s138 = sphi 0, %s135
      %s139 = sphi 0, %s138
      %s155 = sphi 0, %s139
    $region4: #{tpu_custom_call.1} parent=1 // loop_header_branch
      %16 = sbr.rel (%p14) target = $region8
    $region5: #{tpu_custom_call.1} parent=1 // loop_body
      %s18 = ssub.s32 %s13, 1
      %s19 = ssub.s32 %s13, 2
      %s26 = sadd.s32 1, %s21
      %p27 = scmp.ge.s32.totalorder %s26, 1
      %s28 = scalar_select %p27, 0, %s26
      %s29 = sadd.s32 1, %s20
      %s30 = scalar_select %p27, %s29, %s20
      %p31 = scmp.ge.s32.totalorder %s30, 2
      %s32 = scalar_select %p31, 0, %s30
      %s33 = ssub.s32 %s20, %s32
      %s34 = ssub.s32 %s21, %s28
      %s35 = sor.u32 %s33, %s34
      %p36 = scmp.eq.s32.totalorder %s35, 0
      %s38 = sadd.s32 %s37, 1
      %s39 = scalar_select %p36, %s37, %s38
      %p42 = pneg %p36
      %p43 = scmp.eq.s32.totalorder %s13, 1
      %p44 = por %p42, %p43
      %p45 = scmp.ne.s32.totalorder %s37, %s40
      %p46 = scmp.eq.s32.totalorder %s13, 0
      %p47 = por %p45, %p46
      %p48 = scmp.ne.s32.totalorder %s37, %s40
      %p49 = scmp.eq.s32.totalorder %s18, 1
      %p50 = por %p48, %p49
      %p51 = scmp.ne.s32.totalorder %s40, %s41
      %p52 = scmp.eq.s32.totalorder %s18, 0
      %p53 = por %p51, %p52
      %p54 = scmp.ne.s32.totalorder %s40, %s41
      %p55 = scmp.eq.s32.totalorder %s19, 1
      %p56 = por %p54, %p55
      %p58 = scmp.ne.s32.totalorder %s41, %s57
      %p59 = scmp.eq.s32.totalorder %s19, 0
      %p60 = por %p58, %p59
      %s61 = ssub.s32 %s20, %s32
      %s62 = ssub.s32 %s21, %s28
      %s63 = sor.u32 %s61, %s62
      %p64 = scmp.eq.s32.totalorder %s63, 0
      %s66 = sadd.s32 %s65, 1
      %s67 = scalar_select %p64, %s65, %s66
      %p70 = pneg %p64
      %p71 = scmp.eq.s32.totalorder %s13, 1
      %p72 = por %p70, %p71
      %p73 = scmp.ne.s32.totalorder %s65, %s68
      %p74 = scmp.eq.s32.totalorder %s13, 0
      %p75 = por %p73, %p74
      %p76 = scmp.ne.s32.totalorder %s65, %s68
      %p77 = scmp.eq.s32.totalorder %s18, 1
      %p78 = por %p76, %p77
      %p79 = scmp.ne.s32.totalorder %s68, %s69
      %p80 = scmp.eq.s32.totalorder %s18, 0
      %p81 = por %p79, %p80
      %p82 = scmp.ne.s32.totalorder %s68, %s69
      %p83 = scmp.eq.s32.totalorder %s19, 1
      %p84 = por %p82, %p83
      %p86 = scmp.ne.s32.totalorder %s69, %s85
      %p87 = scmp.eq.s32.totalorder %s19, 0
      %p88 = por %p86, %p87
      %s90 = sadd.s32 %s89, 1
      %p93 = scmp.eq.s32.totalorder %s13, 1
      %p94 = scmp.ne.s32.totalorder %s89, %s91
      %p95 = scmp.eq.s32.totalorder %s13, 0
      %p96 = por %p94, %p95
      %p97 = scmp.ne.s32.totalorder %s89, %s91
      %p98 = scmp.eq.s32.totalorder %s18, 1
      %p99 = por %p97, %p98
      %p100 = scmp.ne.s32.totalorder %s91, %s92
      %p101 = scmp.eq.s32.totalorder %s18, 0
      %p102 = por %p100, %p101
      %p103 = scmp.ne.s32.totalorder %s91, %s92
      %p104 = scmp.eq.s32.totalorder %s19, 1
      %p105 = por %p103, %p104
      %p107 = scmp.ne.s32.totalorder %s92, %s106
      %p108 = scmp.eq.s32.totalorder %s19, 0
      %p109 = por %p107, %p108
      %s111 = sadd.s32 %s110, 1
      %p114 = scmp.eq.s32.totalorder %s13, 1
      %p115 = scmp.ne.s32.totalorder %s110, %s112
      %p116 = scmp.eq.s32.totalorder %s13, 0
      %p117 = por %p115, %p116
      %p118 = scmp.ne.s32.totalorder %s110, %s112
      %p119 = scmp.eq.s32.totalorder %s18, 1
      %p120 = por %p118, %p119
      %p121 = scmp.ne.s32.totalorder %s112, %s113
      %p122 = scmp.eq.s32.totalorder %s18, 0
      %p123 = por %p121, %p122
      %p124 = scmp.ne.s32.totalorder %s112, %s113
      %p125 = scmp.eq.s32.totalorder %s19, 1
      %p126 = por %p124, %p125
      %p128 = scmp.ne.s32.totalorder %s113, %s127
      %p129 = scmp.eq.s32.totalorder %s19, 0
      %p130 = por %p128, %p129
      %s131 = ssub.s32 %s20, %s32
      %s132 = ssub.s32 %s21, %s28
      %s133 = sor.u32 %s131, %s132
      %p134 = scmp.eq.s32.totalorder %s133, 0
      %s136 = sadd.s32 %s135, 1
      %s137 = scalar_select %p134, %s135, %s136
      %p140 = pneg %p134
      %p141 = scmp.eq.s32.totalorder %s13, 1
      %p142 = por %p140, %p141
      %p143 = scmp.ne.s32.totalorder %s135, %s138
      %p144 = scmp.eq.s32.totalorder %s13, 0
      %p145 = por %p143, %p144
      %p146 = scmp.ne.s32.totalorder %s135, %s138
      %p147 = scmp.eq.s32.totalorder %s18, 1
      %p148 = por %p146, %p147
      %p149 = scmp.ne.s32.totalorder %s138, %s139
      %p150 = scmp.eq.s32.totalorder %s18, 0
      %p151 = por %p149, %p150
      %p152 = scmp.ne.s32.totalorder %s138, %s139
      %p153 = scmp.eq.s32.totalorder %s19, 1
      %p154 = por %p152, %p153
      %p156 = scmp.ne.s32.totalorder %s139, %s155
      %p157 = scmp.eq.s32.totalorder %s19, 0
      %p158 = por %p156, %p157
      %p159 = scmp.le.s32.totalorder 1, %s13
      %p160 = scmp.lt.s32.totalorder %s13, 3
      %p161 = pnand %p159, %p160
      %p162 = pneg %p161
      // Predicated region
      $region9: #{tpu_custom_call.1} parent=5 // pred_check
        _
      $region10: #{tpu_custom_call.1} parent=5 // pred_check_branch
        %164 = sbr.rel (%p161) target = $region12
      $region11: #{tpu_custom_call.1} parent=5 // pred_region
        %s165 = ssub.s32 %s13, 1
        // Predicated region
        $region13: #{tpu_custom_call.1} parent=11 // pred_check
          %p166 = pneg %p102
        $region14: #{tpu_custom_call.1} parent=11 // pred_check_branch
          %168 = sbr.rel (%p166) target = $region16
        $region15: #{tpu_custom_call.1} parent=11 // pred_region
          _
        $region16: #{tpu_custom_call.1} parent=11 // pred_fallthru
          _
        // Predicated region
        $region17: #{tpu_custom_call.1} parent=11 // pred_check
          %p169 = pneg %p123
        $region18: #{tpu_custom_call.1} parent=11 // pred_check_branch
          %171 = sbr.rel (%p169) target = $region20
        $region19: #{tpu_custom_call.1} parent=11 // pred_region
          _
        $region20: #{tpu_custom_call.1} parent=11 // pred_fallthru
          _
      $region12: #{tpu_custom_call.1} parent=5 // pred_fallthru
        _
      %p172 = scmp.lt.s32.totalorder %s13, 2
      // Predicated region
      $region21: #{tpu_custom_call.1} parent=5 // pred_check
        %p173 = pneg %p172
      $region22: #{tpu_custom_call.1} parent=5 // pred_check_branch
        %175 = sbr.rel (%p173) target = $region24
      $region23: #{tpu_custom_call.1} parent=5 // pred_region
        // Predicated region
        $region25: #{tpu_custom_call.1} parent=23 // pred_check
          %p176 = pneg %p47
        $region26: #{tpu_custom_call.1} parent=23 // pred_check_branch
          %178 = sbr.rel (%p176) target = $region28
        $region27: #{tpu_custom_call.1} parent=23 // pred_region
          %p179 = scmp.lt.s32.totalorder %s20, 1
          %s180 = scalar_select %p179, %s20, 1
          %p181 = scmp.lt.s32.totalorder %s21, 0
          %s182 = scalar_select %p181, %s21, 0
          %s183 = sadd.s32 %s182, %s180
          %s184 = smul.addr %s183, 8
          %s185 = scalar_lea.vmem %s0, %s184
        $region28: #{tpu_custom_call.1} parent=23 // pred_fallthru
          _
        // Predicated region
        $region29: #{tpu_custom_call.1} parent=23 // pred_check
          %p186 = pneg %p75
        $region30: #{tpu_custom_call.1} parent=23 // pred_check_branch
          %188 = sbr.rel (%p186) target = $region32
        $region31: #{tpu_custom_call.1} parent=23 // pred_region
          %p189 = scmp.lt.s32.totalorder %s20, 1
          %s190 = scalar_select %p189, %s20, 1
          %p191 = scmp.lt.s32.totalorder %s21, 0
          %s192 = scalar_select %p191, %s21, 0
          %s193 = sadd.s32 %s192, %s190
          %s194 = scalar_lea.vmem %s1, %s193
        $region32: #{tpu_custom_call.1} parent=23 // pred_fallthru
          _
      $region24: #{tpu_custom_call.1} parent=5 // pred_fallthru
        _
      %p195 = scmp.le.s32.totalorder 1, %s13
      %p196 = scmp.lt.s32.totalorder %s13, 3
      %p197 = pnand %p195, %p196
      %p198 = pneg %p197
      // Predicated region
      $region33: #{tpu_custom_call.1} parent=5 // pred_check
        _
      $region34: #{tpu_custom_call.1} parent=5 // pred_check_branch
        %200 = sbr.rel (%p197) target = $region36
      $region35: #{tpu_custom_call.1} parent=5 // pred_region
        %s201 = ssub.s32 %s13, 1
        %p202 = scmp.lt.s32.totalorder %s22, 1
        %s203 = scalar_select %p202, %s22, 1
        %p204 = scmp.lt.s32.totalorder %s23, 0
        %s205 = scalar_select %p204, %s23, 0
        %s206 = sadd.s32 %s205, %s203
        %s207 = smul.addr %s206, 8
        %s208 = scalar_lea.vmem %s0, %s207
        %p209 = pneg %p53
        %p210 = pneg %p50
        %p211 = scmp.lt.s32.totalorder %s22, 1
        %s212 = scalar_select %p211, %s22, 1
        %p213 = scmp.lt.s32.totalorder %s23, 0
        %s214 = scalar_select %p213, %s23, 0
        %s215 = sadd.s32 %s214, %s212
        %s216 = scalar_lea.vmem %s1, %s215
        %p217 = pneg %p81
        %p218 = pneg %p78
        %p219 = pneg %p102
        %p220 = pneg %p99
        %p221 = pneg %p123
        %p222 = pneg %p120
        %p223 = pneg %p151
        %p224 = pneg %p148
        %s225 = sand.u32 %s138, 1
        %s226 = scalar_lea.sflag [#allocation3], %s225
        %s227 = sand.u32 %s138, 1
        %s228 = smul.addr %s227, 8
        %s229 = scalar_lea.vmem [#allocation2], %s228
        %p230 = scmp.lt.s32.totalorder %s22, 1
        %s231 = scalar_select %p230, %s22, 1
        %p232 = scmp.lt.s32.totalorder %s23, 0
        %s233 = scalar_select %p232, %s23, 0
        %s234 = sadd.s32 %s233, %s231
        %s235 = smul.addr %s234, 8
        %s236 = scalar_lea.vmem %s0, %s235
        %p237 = scmp.lt.s32.totalorder %s22, 1
        %s238 = scalar_select %p237, %s22, 1
        %p239 = scmp.lt.s32.totalorder %s23, 0
        %s240 = scalar_select %p239, %s23, 0
        %s241 = sadd.s32 %s240, %s238
        %s242 = scalar_lea.vmem %s1, %s241
        %v243 = vld [vmem:[%s236] sm:$0xff]
        %v244 = vld [vmem:[%s242] sm:$0x1]
        %v245 = vld [vmem:[%s2] sm:$0xff]
        %v246 = vld [vmem:[%s3] sm:$0xff]
        %v247 = vmul.f32 %v246, 1.442695
        %v248 = vpow.pop %v247
        %250 = vset.pattern.permute.xlu0 0
        %251 = vperm.xlu0 %250, %v248
        %v252 = vpop.permute.xlu0 %251
        %v254 = vmul.f32 %v252, %v243
        %256 = vset.pattern.permute.xlu0 0
        %257 = vperm.xlu0 %256, %v245
        %v258 = vpop.permute.xlu0 %257
        %v260 = vadd.f32 %v258, %v254
        %v262 = vlaneseq
        %v263 = vshrl.u32 %v262, 7
        %v264 = vsub.s32 0, %v263
        %v265 = vrot.slane %v244, %v264
        %v267 = vmul.f32 %v260, %v265
        %268 = vst [vmem:[%s229] sm:$0xff] %v267
        %s269 = sand.u32 %s138, 1
        %s270 = scalar_lea.sflag [#allocation3], %s269
        %s271 = sand.u32 %s138, 1
        %s272 = smul.addr %s271, 8
        %s273 = scalar_lea.vmem [#allocation2], %s272
        // Predicated region
        $region37: #{tpu_custom_call.1} parent=35 // pred_check
          %p274 = pneg %p148
        $region38: #{tpu_custom_call.1} parent=35 // pred_check_branch
          %276 = sbr.rel (%p274) target = $region40
        $region39: #{tpu_custom_call.1} parent=35 // pred_region
          %s278 = ssub.s32 128, 128
          %279 = vsyncadd %s270, %s278
          %s280 = sadd.s32 %s23, %s22
          %s281 = smul.addr %s280, 128
          %s282 = scalar_lea.hbm %s4, %s281
          %s284 = sshll.u32 %s273, 4
          %s285 = int_to_ptr.vmem [resolvable:$true] %s284
          %287 = dma.vmem_to_hbm [thread:$0]  %s285, 128, %s282, %s270
        $region40: #{tpu_custom_call.1} parent=35 // pred_fallthru
          _
      $region36: #{tpu_custom_call.1} parent=5 // pred_fallthru
        _
      %p288 = scmp.le.s32.totalorder 2, %s13
      // Predicated region
      $region41: #{tpu_custom_call.1} parent=5 // pred_check
        %p289 = pneg %p288
      $region42: #{tpu_custom_call.1} parent=5 // pred_check_branch
        %291 = sbr.rel (%p289) target = $region44
      $region43: #{tpu_custom_call.1} parent=5 // pred_region
        %s292 = ssub.s32 %s13, 2
        // Predicated region
        $region45: #{tpu_custom_call.1} parent=43 // pred_check
          %p293 = pneg %p154
        $region46: #{tpu_custom_call.1} parent=43 // pred_check_branch
          %295 = sbr.rel (%p293) target = $region48
        $region47: #{tpu_custom_call.1} parent=43 // pred_region
          %s296 = sand.u32 %s139, 1
          %s297 = scalar_lea.sflag [#allocation3], %s296
          %s298 = sand.u32 %s139, 1
          %s299 = smul.addr %s298, 8
          %s300 = scalar_lea.vmem [#allocation2], %s299
          %301 = dma.done %s297, 128
        $region48: #{tpu_custom_call.1} parent=43 // pred_fallthru
          _
      $region44: #{tpu_custom_call.1} parent=5 // pred_fallthru
        _
    $region6: #{tpu_custom_call.1} parent=1 // loop_footer
      %s17 = sadd.s32 1, %s13
    $region7: #{tpu_custom_call.1} parent=1 // loop_footer_branch
      %12 = sbr.rel target = $region3
    $region8: #{tpu_custom_call.1} parent=1 // loop_exit
      _
    %302 = vsyncpa [#allocation3], 1
    %s303 = scalar_lea.sflag [#allocation3], 1
    %304 = vsyncpa %s303, 1

</llo_original>
